<compile_context>
chip_gen: v5e
topology: v5e:2x2
jax: 0.10.0
libtpu: 0.0.40
codegen_flags: <defaults>
</compile_context>

<pallas_src>
import math
import functools

import jax
import jax.numpy as jnp
from jax import lax
from jax.experimental import pallas as pl
from jax.experimental.pallas import tpu as pltpu


# --------------------------------------------------------------------------
# helpers
# --------------------------------------------------------------------------
_CONTRACT_LAST = (((1,), (1,)), ((), ()))   # contract dim 1 of lhs with dim 1 of rhs
_PALLAS_MIN_WEIGHT_ELEMS = 16384            # below this, a GEMV runs as plain XLA [R9]
_HI = jax.lax.Precision.HIGHEST


@functools.lru_cache(maxsize=None)
def _vmem_limit_bytes():
    """Generation-aware scoped-VMEM limit (3/4 of physical, capped at 96 MiB). [R3-R5]"""
    phys = 64 * 1024 * 1024                 # conservative fallback (v7x per-TC)
    try:
        info = pltpu.get_tpu_info()
        phys = int(getattr(info, "vmem_capacity_bytes", phys))
    except Exception:
        pass
    return max(32 * 1024 * 1024, min((phys * 3) // 4, 96 * 1024 * 1024))


def _tile_budget():
    """Bytes we allow for a kernel's resident working set (headroom under limit)."""
    return (_vmem_limit_bytes() * 3) // 4


def _compiler_params(semantics):
    return pltpu.CompilerParams(
        dimension_semantics=semantics,
        vmem_limit_bytes=_vmem_limit_bytes(),
    )


def _tile_and_pad(dim, target, align):
    """Pick a legal TPU tile for `dim`:
       - dim <= target             -> tile = dim (full-dim block, always legal)
       - aligned divisor <= target -> largest such divisor
       - otherwise                 -> tile = aligned-down target, dim zero-padded [R11]
    Returns (tile, padded_dim)."""
    if dim <= target:
        return dim, dim
    t = max(align, (target // align) * align)
    s = t
    while s >= align:
        if dim % s == 0:
            return s, dim
        s -= align
    padded = ((dim + t - 1) // t) * t
    return t, padded


def _weight_spec(block_shape, index_map, buffers=2):
    """Weight-streaming BlockSpec; requests deeper (3x) buffering when there are
    enough blocks to pipeline (hides DMA issue latency on ~0.5 flop/byte streams). [R7]"""
    if buffers > 2:
        try:
            return pl.BlockSpec(block_shape, index_map,
                                pipeline_mode=pl.Buffered(buffers))
        except Exception:
            pass
    return pl.BlockSpec(block_shape, index_map)


def _nonlinear(name):
    if name == "tanh":
        return jnp.tanh
    if name == "sigmoid":
        return jax.nn.sigmoid
    if name == "softsign":
        return jax.nn.soft_sign
    if name == "relu":
        return lambda v: jnp.maximum(v, 0.0)
    raise ValueError(f"unknown non_linear {name!r}")


# --------------------------------------------------------------------------
# kernels
# --------------------------------------------------------------------------
def _linear_kernel(*refs, has_bias, reduce_k):
    """y_tile = x(i,:) @ W(j,:)^T (+ bias).  reduce_k=False: single-shot (fast path);
    reduce_k=True: accumulate directly into the resident f32 output block. [R1, R8]"""
    if has_bias:
        x_ref, w_ref, b_ref, o_ref = refs
    else:
        x_ref, w_ref, o_ref = refs
        b_ref = None

    part = lax.dot_general(x_ref[...], w_ref[...], _CONTRACT_LAST,
                           preferred_element_type=jnp.float32)

    if not reduce_k:
        if has_bias:
            part = part + b_ref[...]
        o_ref[...] = part.astype(o_ref.dtype)
        return

    k = pl.program_id(2)

    @pl.when(k == 0)
    def _():
        o_ref[...] = jnp.zeros_like(o_ref)

    o_ref[...] += part

    if has_bias:
        @pl.when(k == pl.num_programs(2) - 1)
        def _():
            o_ref[...] += b_ref[...]


def _adapt_gemv_kernel(*refs, act, has_ada, out2d):
    """o = act(v_main @ Wm^T [+ v_ada @ Wa^T] + b), tiled over (N, K_main).
    The concat [v_main, v_ada] is never materialized; the small "ada"
    contraction is added at finalize (its tile is resident across k)."""
    if has_ada:
        vm_ref, wm_ref, va_ref, wa_ref, b_ref, o_ref, acc_ref = refs
    else:
        vm_ref, wm_ref, b_ref, o_ref, acc_ref = refs

    k = pl.program_id(1)

    @pl.when(k == 0)
    def _():
        acc_ref[...] = jnp.zeros_like(acc_ref)

    acc_ref[...] += lax.dot_general(
        vm_ref[...].astype(wm_ref.dtype), wm_ref[...], _CONTRACT_LAST,
        preferred_element_type=jnp.float32)

    @pl.when(k == pl.num_programs(1) - 1)
    def _():
        res = acc_ref[...] + b_ref[...]
        if has_ada:
            res += lax.dot_general(
                va_ref[...].astype(wa_ref.dtype), wa_ref[...], _CONTRACT_LAST,
                preferred_element_type=jnp.float32)
        res = act(res)
        if out2d is not None:                       # direct 2-D weight tile [R10]
            res = res.reshape(out2d)
        o_ref[...] = res.astype(o_ref.dtype)


# --------------------------------------------------------------------------
# pallas_call wrappers
# --------------------------------------------------------------------------
def pallas_linear(x, weight, bias, *, matmul_dtype=jnp.bfloat16,
                  tm_target=256, tn_target=512, tk_target=1024):
    """y = x @ weight.T + bias ; weight in PyTorch (N, K) layout, f32 output."""
    B, K = x.shape
    N = weight.shape[0]
    f32 = jnp.float32

    x = x.astype(matmul_dtype)                      # bf16 MXU operands [R2]
    weight = weight.astype(matmul_dtype)
    b2 = None if bias is None else bias.astype(f32)

    budget = _tile_budget()
    itemsize = jnp.dtype(matmul_dtype).itemsize
    max_w_elems = max(128 * 128, budget // (6 * itemsize))
    while tn_target * tk_target > max_w_elems:      # per-generation tile cap [R3-R5]
        if tk_target > 256:
            tk_target //= 2
        elif tn_target > 256:
            tn_target //= 2
        else:
            break

    tm, Bp = _tile_and_pad(B, tm_target, 8)
    tn, Np = _tile_and_pad(N, tn_target, 128)

    # v7x (2 TCs): guarantee >=2 tiles along a "parallel" axis when possible. [R6]
    if (Bp // tm) * (Np // tn) < 2 and tn % 256 == 0:
        tn //= 2

    # Skinny-batch / small-K fast path: whole K resident, no reduction axis. [R8]
    fast_bytes = (3 * tn * K * itemsize + 2 * tm * K * itemsize
                  + 2 * tm * tn * 4 + 2 * tn * 4)
    use_fast = fast_bytes <= budget
    if use_fast:
        tk, Kp = K, K
    else:
        tk, Kp = _tile_and_pad(K, tk_target, 128)

    if Bp != B:
        x = jnp.pad(x, ((0, Bp - B), (0, 0)))
    if Kp != K:
        x = jnp.pad(x, ((0, 0), (0, Kp - K)))
        weight = jnp.pad(weight, ((0, 0), (0, Kp - K)))
    if Np != N:
        weight = jnp.pad(weight, ((0, Np - N), (0, 0)))
        if b2 is not None:
            b2 = jnp.pad(b2, (0, Np - N))

    has_bias = b2 is not None
    cost = pl.CostEstimate(
        flops=2 * Bp * Np * Kp, transcendentals=0,
        bytes_accessed=itemsize * (Bp * Kp + Np * Kp) + 4 * (Bp * Np + Np))

    if use_fast:
        grid = (Bp // tm, Np // tn)
        in_specs = [pl.BlockSpec((tm, Kp), lambda i, j: (i, 0)),
                    _weight_spec((tn, Kp), lambda i, j: (j, 0),
                                 buffers=3 if grid[1] >= 3 else 2)]
        args = [x, weight]
        if has_bias:
            in_specs.append(pl.BlockSpec((1, tn), lambda i, j: (0, j)))
            args.append(b2.reshape(1, Np))
        y = pl.pallas_call(
            functools.partial(_linear_kernel, has_bias=has_bias, reduce_k=False),
            out_shape=jax.ShapeDtypeStruct((Bp, Np), f32),
            grid_spec=pltpu.PrefetchScalarGridSpec(
                num_scalar_prefetch=0, grid=grid,
                in_specs=in_specs,
                out_specs=pl.BlockSpec((tm, tn), lambda i, j: (i, j))),
            compiler_params=_compiler_params(("parallel", "parallel")),
            cost_estimate=cost,
        )(*args)
    else:
        grid = (Bp // tm, Np // tn, Kp // tk)
        in_specs = [pl.BlockSpec((tm, tk), lambda i, j, k: (i, k)),
                    _weight_spec((tn, tk), lambda i, j, k: (j, k),
                                 buffers=3 if grid[1] * grid[2] >= 3 else 2)]
        args = [x, weight]
        if has_bias:
            in_specs.append(pl.BlockSpec((1, tn), lambda i, j, k: (0, j)))
            args.append(b2.reshape(1, Np))
        y = pl.pallas_call(
            functools.partial(_linear_kernel, has_bias=has_bias, reduce_k=True),
            out_shape=jax.ShapeDtypeStruct((Bp, Np), f32),
            grid_spec=pltpu.PrefetchScalarGridSpec(
                num_scalar_prefetch=0, grid=grid,
                in_specs=in_specs,
                out_specs=pl.BlockSpec((tm, tn), lambda i, j, k: (i, j))),
            compiler_params=_compiler_params(("parallel", "parallel", "arbitrary")),
            cost_estimate=cost,
        )(*args)

    if Bp != B or Np != N:
        y = y[:B, :N]
    return y


def _adapt_gemv(v_main, w_main, b, act_name, *, v_ada=None, w_ada=None,
                out_dtype=jnp.float32, out2d=None,
                tn_target=2048, tk_target=2048):
    """act(v_main @ w_main^T [+ v_ada @ w_ada^T] + b).

    Small problems run as plain XLA (launch overhead dominates) [R9]; large ones
    as a tiled, weight-streaming Pallas GEMV with an f32 accumulator."""
    f32 = jnp.float32
    act = _nonlinear(act_name)
    Km = int(v_main.shape[0])
    N = int(w_main.shape[0])
    Ka = 0 if v_ada is None else int(v_ada.shape[0])
    has_ada = v_ada is not None

    if N * (Km + Ka) < _PALLAS_MIN_WEIGHT_ELEMS:
        res = jnp.dot(v_main.astype(f32), w_main.astype(f32).T,
                      preferred_element_type=f32) + b.astype(f32)
        if has_ada:
            res = res + jnp.dot(v_ada.astype(f32), w_ada.astype(f32).T,
                                preferred_element_type=f32)
        res = act(res).astype(out_dtype)
        return res.reshape(out2d) if out2d is not None else res

    budget = _tile_budget()
    itemsize = jnp.dtype(w_main.dtype).itemsize
    max_w_elems = max(128 * 128, budget // (5 * itemsize))
    while tn_target * tk_target > max_w_elems:      # per-generation tile cap [R3-R5]
        if tk_target > 256:
            tk_target //= 2
        elif tn_target > 256:
            tn_target //= 2
        else:
            break

    tn, Np = _tile_and_pad(N, tn_target, 128)
    tk, Kp = _tile_and_pad(Km, tk_target, 128)

    # v7x: make sure the "parallel" N axis has >= 2 tiles so both TCs get work. [R6]
    if Np // tn < 2 and tn % 256 == 0:
        tn //= 2

    if Kp != Km:
        v_main = jnp.pad(v_main, (0, Kp - Km))
        w_main = jnp.pad(w_main, ((0, 0), (0, Kp - Km)))
    if Np != N:
        w_main = jnp.pad(w_main, ((0, Np - N), (0, 0)))
        b = jnp.pad(b, (0, Np - N))
        if has_ada:
            w_ada = jnp.pad(w_ada, ((0, Np - N), (0, 0)))

    # Direct 2-D (dim_out, dim_in) output when lane-dense & block-legal. [R10]
    use2d, rows_blk, dim_in_ = False, 0, 0
    if out2d is not None and Np == N:
        dim_out_, dim_in_ = out2d
        if dim_in_ % 128 == 0 and tn % dim_in_ == 0:
            rows_blk = tn // dim_in_
            use2d = (rows_blk % 8 == 0) or (rows_blk == dim_out_)

    grid = (Np // tn, Kp // tk)
    w_blocks = grid[0] * grid[1]

    in_specs = [pl.BlockSpec((1, tk), lambda j, k: (0, k)),
                _weight_spec((tn, tk), lambda j, k: (j, k),
                             buffers=3 if w_blocks >= 3 else 2)]
    args = [v_main.reshape(1, Kp), w_main]
    if has_ada:
        in_specs += [pl.BlockSpec((1, Ka), lambda j, k: (0, 0)),
                     pl.BlockSpec((tn, Ka), lambda j, k: (j, 0))]
        args += [v_ada.reshape(1, Ka), w_ada]
    in_specs.append(pl.BlockSpec((1, tn), lambda j, k: (0, j)))
    args.append(b.astype(f32).reshape(1, Np))

    if use2d:
        out_shape = jax.ShapeDtypeStruct(out2d, out_dtype)
        out_spec = pl.BlockSpec((rows_blk, dim_in_), lambda j, k: (j, 0))
        k_out2d = (rows_blk, dim_in_)
    else:
        out_shape = jax.ShapeDtypeStruct((1, Np), out_dtype)
        out_spec = pl.BlockSpec((1, tn), lambda j, k: (0, j))
        k_out2d = None

    cost = pl.CostEstimate(
        flops=2 * Np * (Kp + Ka),
        transcendentals=Np if act_name in ("tanh", "sigmoid") else 0,
        bytes_accessed=itemsize * Np * (Kp + Ka) + 4 * (Kp + Ka + 2 * Np))

    res = pl.pallas_call(
        functools.partial(_adapt_gemv_kernel, act=act, has_ada=has_ada,
                          out2d=k_out2d),
        out_shape=out_shape,
        grid_spec=pltpu.PrefetchScalarGridSpec(
            num_scalar_prefetch=0, grid=grid,
            in_specs=in_specs, out_specs=out_spec,
            scratch_shapes=[pltpu.VMEM((1, tn), jnp.float32)]),
        compiler_params=_compiler_params(("parallel", "arbitrary")),
        cost_estimate=cost,
    )(*args)

    if use2d:
        return res
    res = res.reshape(Np)[:N]
    return res.reshape(out2d) if out2d is not None else res


# --------------------------------------------------------------------------
# module
# --------------------------------------------------------------------------
class LinearWithParamAdaptWithOpt:
    """JAX/Pallas port of Linear_with_param_adapt_with_opt (forward only)."""

    def __init__(self, dim_in, dim_out, dim_extra_vec=-1, dim_mlp=-1,
                 bias=True, non_linear="tanh", key=None, use_bf16_matmul=True):
        self.use_bias = bias
        self.dim_in = dim_in
        self.dim_out = dim_out
        self.dim_extra_vec = dim_extra_vec
        self.dim_mlp = dim_mlp
        self.non_linear = non_linear
        self.fc_to_adapt = dim_mlp == -1
        self.will_adapt = dim_extra_vec != -1
        self.matmul_dtype = jnp.bfloat16 if use_bf16_matmul else jnp.float32   # [R2]

        if key is None:
            key = jax.random.PRNGKey(0)
        keys = jax.random.split(key, 10)

        def _linear_params(kw, kb, fan_out, fan_in):
            bound = 1.0 / math.sqrt(fan_in)
            w = jax.random.uniform(kw, (fan_out, fan_in), jnp.float32, -bound, bound)
            b = jax.random.uniform(kb, (fan_out,), jnp.float32, -bound, bound)
            return w, b

        # main weight: kaiming_uniform_(a=sqrt(5)) == U(-1/sqrt(fan_in), 1/sqrt(fan_in))
        wb = 1.0 / math.sqrt(dim_in)
        self.weight = jax.random.uniform(keys[0], (dim_out, dim_in), jnp.float32, -wb, wb)
        self.weight_mm = self.weight.astype(self.matmul_dtype)   # matmul copy (non-adapt path)
        if self.use_bias:
            bb = 1.0 / math.sqrt(dim_out)
            self.bias = jax.random.uniform(keys[1], (dim_out,), jnp.float32, -bb, bb)
        else:
            self.bias = None

        if not self.will_adapt:
            return

        n_flat = dim_out * dim_in
        if self.fc_to_adapt:
            tw1, self.tw1_b = _linear_params(keys[2], keys[3],
                                             n_flat, n_flat + dim_extra_vec)
        else:
            tw1, self.tw1_b = _linear_params(keys[2], keys[3],
                                             dim_mlp, n_flat + dim_extra_vec)
            tw2, self.tw2_b = _linear_params(keys[4], keys[5], n_flat, dim_mlp)
            self.tw2_w = tw2.astype(self.matmul_dtype)
        # torch.cat([weight.flatten(), adapt_vec]) is never materialized: split
        # the first transform weight's columns once at construction.
        self.tw1_w_main = tw1[:, :n_flat].astype(self.matmul_dtype)
        self.tw1_w_ada = tw1[:, n_flat:].astype(self.matmul_dtype)

        if self.use_bias:
            if self.fc_to_adapt:
                tb1, self.tb1_b = _linear_params(keys[6], keys[7],
                                                 dim_out, dim_out + dim_extra_vec)
            else:
                tb1, self.tb1_b = _linear_params(keys[6], keys[7],
                                                 dim_mlp, dim_out + dim_extra_vec)
                self.tb2_w, self.tb2_b = _linear_params(keys[8], keys[9],
                                                        dim_out, dim_mlp)
            # bias-transform weights are tiny; kept f32 (XLA path most of the time) [R9]
            self.tb1_w_main = tb1[:, :dim_out]
            self.tb1_w_ada = tb1[:, dim_out:]

    def __call__(self, x, adapt_vector_for_weight=None, adapt_vector_for_bias=None):
        out2d = (self.dim_out, self.dim_in)

        # --- weight adaptation (big transform weights -> Pallas GEMV) ---
        if adapt_vector_for_weight is not None and self.will_adapt:
            v_main = self.weight.reshape(-1)
            v_ada = adapt_vector_for_weight.reshape(-1).astype(jnp.float32)
            if self.fc_to_adapt:
                new_w = _adapt_gemv(v_main, self.tw1_w_main, self.tw1_b,
                                    self.non_linear, v_ada=v_ada,
                                    w_ada=self.tw1_w_ada,
                                    out_dtype=self.matmul_dtype, out2d=out2d)
            else:
                h = _adapt_gemv(v_main, self.tw1_w_main, self.tw1_b, "relu",
                                v_ada=v_ada, w_ada=self.tw1_w_ada,
                                out_dtype=self.matmul_dtype)
                new_w = _adapt_gemv(h, self.tw2_w, self.tw2_b, self.non_linear,
                                    out_dtype=self.matmul_dtype, out2d=out2d)
            weight = new_w.reshape(out2d)
        else:
            weight = self.weight_mm

        # --- bias adaptation (tiny GEMVs -> plain XLA unless genuinely large) [R9] ---
        if (adapt_vector_for_bias is not None and self.use_bias and self.will_adapt):
            b_main = self.bias.reshape(-1)
            b_ada = adapt_vector_for_bias.reshape(-1).astype(jnp.float32)
            if self.fc_to_adapt:
                bias = _adapt_gemv(b_main, self.tb1_w_main, self.tb1_b,
                                   self.non_linear, v_ada=b_ada,
                                   w_ada=self.tb1_w_ada, out_dtype=jnp.float32)
            else:
                hb = _adapt_gemv(b_main, self.tb1_w_main, self.tb1_b, "relu",
                                 v_ada=b_ada, w_ada=self.tb1_w_ada,
                                 out_dtype=jnp.float32)
                bias = _adapt_gemv(hb, self.tb2_w, self.tb2_b, self.non_linear,
                                   out_dtype=jnp.float32)
            bias = bias.reshape(self.bias.shape)
        else:
            bias = self.bias

        # --- main linear: y = x @ weight.T + bias (weight kept in (out, in)) ---
        return pallas_linear(x, weight, bias, matmul_dtype=self.matmul_dtype)


# --------------------------------------------------------------------------
# pure-JAX reference (correctness check only)
# --------------------------------------------------------------------------
def _reference(mod, x, ada_w=None, ada_b=None):
    f32 = jnp.float32
    nl = _nonlinear(mod.non_linear)
    weight = mod.weight.astype(f32)
    bias = None if mod.bias is None else mod.bias.astype(f32)

    if ada_w is not None and mod.will_adapt:
        v = jnp.concatenate([mod.weight.reshape(-1), ada_w.reshape(-1)]).astype(f32)
        tw1 = jnp.concatenate([mod.tw1_w_main.astype(f32),
                               mod.tw1_w_ada.astype(f32)], axis=1)
        h = jnp.dot(v, tw1.T, precision=_HI) + mod.tw1_b
        if mod.fc_to_adapt:
            weight = nl(h).reshape(mod.dim_out, mod.dim_in)
        else:
            h2 = jnp.dot(jnp.maximum(h, 0.0), mod.tw2_w.astype(f32).T,
                         precision=_HI) + mod.tw2_b
            weight = nl(h2).reshape(mod.dim_out, mod.dim_in)

    if ada_b is not None and mod.use_bias and mod.will_adapt:
        vb = jnp.concatenate([mod.bias.reshape(-1), ada_b.reshape(-1)]).astype(f32)
        tb1 = jnp.concatenate([mod.tb1_w_main, mod.tb1_w_ada], axis=1)
        hb = jnp.dot(vb, tb1.T, precision=_HI) + mod.tb1_b
        if mod.fc_to_adapt:
            bias = nl(hb)
        else:
            bias = nl(jnp.dot(jnp.maximum(hb, 0.0), mod.tb2_w.T,
                              precision=_HI) + mod.tb2_b)

    y = jnp.dot(x, weight.T, precision=_HI)
    if bias is not None:
        y = y + bias
    return y


if __name__ == "__main__":
    key = jax.random.PRNGKey(0)
    k1, k2, k3, kx, kaw, kab, kx2 = jax.random.split(key, 7)

    dim_extra, batch = 8, 4
    ada_w = jax.random.normal(kaw, (dim_extra,), jnp.float32)
    ada_b = jax.random.normal(kab, (dim_extra,), jnp.float32)

    # --- config 1: MLP-adapt path (dim_mlp != -1), bias, bf16 MXU operands ---
    dim_in, dim_out, dim_mlp = 32, 16, 64
    x = jax.random.normal(kx, (batch, dim_in), jnp.float32)
    mod = LinearWithParamAdaptWithOpt(dim_in, dim_out, dim_extra_vec=dim_extra,
                                      dim_mlp=dim_mlp, bias=True,
                                      non_linear="tanh", key=k1,
                                      use_bf16_matmul=True)
    y = jax.block_until_ready(mod(x, ada_w, ada_b))
    y_ref = _reference(mod, x, ada_w, ada_b)
    assert y.shape == (batch, dim_out)
    err = float(jnp.max(jnp.abs(y - y_ref)))
    assert jnp.allclose(y, y_ref, atol=1e-1, rtol=1e-1), f"MLP-adapt mismatch {err}"

    # --- config 2: single-FC adapt, f32 matmuls, exercises 2-D direct weight out ---
    dim_in2, dim_out2 = 128, 16
    x2 = jax.random.normal(kx2, (batch, dim_in2), jnp.float32)
    mod_fc = LinearWithParamAdaptWithOpt(dim_in2, dim_out2, dim_extra_vec=dim_extra,
                                         dim_mlp=-1, bias=True,
                                         non_linear="sigmoid", key=k2,
                                         use_bf16_matmul=False)
    y_fc = jax.block_until_ready(mod_fc(x2, ada_w, ada_b))
    y_fc_ref = _reference(mod_fc, x2, ada_w, ada_b)
    err_fc = float(jnp.max(jnp.abs(y_fc - y_fc_ref)))
    assert jnp.allclose(y_fc, y_fc_ref, atol=5e-3, rtol=5e-3), \
        f"FC-adapt mismatch {err_fc}"

    # --- config 3: no adaptation, no bias ---
    mod_nb = LinearWithParamAdaptWithOpt(dim_in, dim_out, bias=False, key=k3)
    y_nb = jax.block_until_ready(mod_nb(x))
    y_nb_ref = x @ mod_nb.weight.T
    assert jnp.allclose(y_nb, y_nb_ref, atol=5e-2, rtol=5e-2), "no-bias mismatch"

    print("KERNEL_OK")
</pallas_src>

<mosaic_0001>
module attributes {stable_mosaic.version = 11 : i64} {
  func.func @_adapt_gemv_kernel(%arg0: i32, %arg1: i32, %arg2: memref<1x512xf32, #tpu.memory_space<vmem>>, %arg3: memref<64x512xbf16, #tpu.memory_space<vmem>>, %arg4: memref<1x8xf32, #tpu.memory_space<vmem>>, %arg5: memref<64x8xbf16, #tpu.memory_space<vmem>>, %arg6: memref<1x64xf32, #tpu.memory_space<vmem>>, %arg7: memref<1x64xbf16, #tpu.memory_space<vmem>>, %arg8: memref<1x64xf32, #tpu.memory_space<vmem>>) attributes {dimension_semantics = [#tpu.dimension_semantics<parallel>, #tpu.dimension_semantics<arbitrary>], iteration_bounds = array<i64: 1, 1>, scalar_prefetch = 0 : i64, scratch_operands = 1 : i64, tpu.core_type = #tpu.core_type<tc>, window_params = [{transform_indices = @transform_0, window_bounds = array<i64: 1, 512>}, {transform_indices = @transform_1, window_bounds = array<i64: 64, 512>}, {pipeline_mode = #tpu.pipeline_mode<synchronous>, transform_indices = @transform_2, window_bounds = array<i64: 1, 8>}, {transform_indices = @transform_3, window_bounds = array<i64: 64, 8>}, {transform_indices = @transform_4, window_bounds = array<i64: 1, 64>}, {transform_indices = @transform_5, window_bounds = array<i64: 1, 64>}]} {
    %c0_i32 = arith.constant 0 : i32
    %0 = arith.cmpi eq, %arg1, %c0_i32 : i32
    %1 = arith.extui %0 : i1 to i32
    %c0_i32_0 = arith.constant 0 : i32
    %2 = arith.cmpi ne, %1, %c0_i32_0 : i32
    scf.if %2 {
      %cst_10 = arith.constant 0.000000e+00 : f32
      %13 = vector.broadcast %cst_10 : f32 to vector<1x64xf32>
      %c0_11 = arith.constant 0 : index
      %c0_12 = arith.constant 0 : index
      %14 = vector.load %arg8[%c0_11, %c0_12] : memref<1x64xf32, #tpu.memory_space<vmem>>, vector<1x64xf32>
      tpu.vector_store %arg8[%c0_11, %c0_12], %13 {strides = array<i32>} : memref<1x64xf32, #tpu.memory_space<vmem>>, vector<1x64xf32>,
    } else {
    }
    %c0 = arith.constant 0 : index
    %c0_1 = arith.constant 0 : index
    %3 = vector.load %arg8[%c0, %c0_1] : memref<1x64xf32, #tpu.memory_space<vmem>>, vector<1x64xf32>
    %c0_2 = arith.constant 0 : index
    %c0_3 = arith.constant 0 : index
    %4 = vector.load %arg2[%c0_2, %c0_3] : memref<1x512xf32, #tpu.memory_space<vmem>>, vector<1x512xf32>
    %5 = arith.truncf %4 : vector<1x512xf32> to vector<1x512xbf16>
    %c0_4 = arith.constant 0 : index
    %c0_5 = arith.constant 0 : index
    %6 = vector.load %arg3[%c0_4, %c0_5] : memref<64x512xbf16, #tpu.memory_space<vmem>>, vector<64x512xbf16>
    %cst = arith.constant dense<0.000000e+00> : vector<1x64xf32>
    %7 = tpu.matmul %5, %6, %cst {dimension_numbers = #tpu.dot_dimension_numbers<[1], [1], [0], [0], [0, 0, 1, 0], [], []>} : vector<1x512xbf16>, vector<64x512xbf16>, vector<1x64xf32> -> vector<1x64xf32>
    %8 = arith.addf %3, %7 : vector<1x64xf32>
    %c0_6 = arith.constant 0 : index
    %c0_7 = arith.constant 0 : index
    %9 = vector.load %arg8[%c0_6, %c0_7] : memref<1x64xf32, #tpu.memory_space<vmem>>, vector<1x64xf32>
    tpu.vector_store %arg8[%c0_6, %c0_7], %8 {strides = array<i32>} : memref<1x64xf32, #tpu.memory_space<vmem>>, vector<1x64xf32>,
    %c0_i32_8 = arith.constant 0 : i32
    %10 = arith.cmpi eq, %arg1, %c0_i32_8 : i32
    %11 = arith.extui %10 : i1 to i32
    %c0_i32_9 = arith.constant 0 : i32
    %12 = arith.cmpi ne, %11, %c0_i32_9 : i32
    scf.if %12 {
      %c0_10 = arith.constant 0 : index
      %c0_11 = arith.constant 0 : index
      %13 = vector.load %arg8[%c0_10, %c0_11] : memref<1x64xf32, #tpu.memory_space<vmem>>, vector<1x64xf32>
      %c0_12 = arith.constant 0 : index
      %c0_13 = arith.constant 0 : index
      %14 = vector.load %arg6[%c0_12, %c0_13] : memref<1x64xf32, #tpu.memory_space<vmem>>, vector<1x64xf32>
      %15 = arith.addf %13, %14 : vector<1x64xf32>
      %c0_14 = arith.constant 0 : index
      %c0_15 = arith.constant 0 : index
      %16 = vector.load %arg4[%c0_14, %c0_15] : memref<1x8xf32, #tpu.memory_space<vmem>>, vector<1x8xf32>
      %17 = arith.truncf %16 : vector<1x8xf32> to vector<1x8xbf16>
      %c0_16 = arith.constant 0 : index
      %c0_17 = arith.constant 0 : index
      %18 = vector.load %arg5[%c0_16, %c0_17] : memref<64x8xbf16, #tpu.memory_space<vmem>>, vector<64x8xbf16>
      %cst_18 = arith.constant dense<0.000000e+00> : vector<1x64xf32>
      %19 = tpu.matmul %17, %18, %cst_18 {dimension_numbers = #tpu.dot_dimension_numbers<[1], [1], [0], [0], [0, 0, 1, 0], [], []>} : vector<1x8xbf16>, vector<64x8xbf16>, vector<1x64xf32> -> vector<1x64xf32>
      %20 = arith.addf %15, %19 : vector<1x64xf32>
      %cst_19 = arith.constant 0.000000e+00 : f32
      %21 = vector.broadcast %cst_19 : f32 to vector<1x64xf32>
      %22 = arith.maximumf %20, %21 : vector<1x64xf32>
      %23 = arith.truncf %22 : vector<1x64xf32> to vector<1x64xbf16>
      %c0_20 = arith.constant 0 : index
      %c0_21 = arith.constant 0 : index
      %24 = vector.load %arg7[%c0_20, %c0_21] : memref<1x64xbf16, #tpu.memory_space<vmem>>, vector<1x64xbf16>
      tpu.vector_store %arg7[%c0_20, %c0_21], %23 {strides = array<i32>} : memref<1x64xbf16, #tpu.memory_space<vmem>>, vector<1x64xbf16>,
    } else {
    }
    return
  }
  func.func @transform_0(%arg0: i32, %arg1: i32) -> (i32, i32) {
    %c0_i32 = arith.constant 0 : i32
    %c0_i32_0 = arith.constant 0 : i32
    return %c0_i32, %arg1 : i32, i32
  }
  func.func @transform_1(%arg0: i32, %arg1: i32) -> (i32, i32) {
    %c0_i32 = arith.constant 0 : i32
    return %arg0, %arg1 : i32, i32
  }
  func.func @transform_2(%arg0: i32, %arg1: i32) -> (i32, i32) {
    %c0_i32 = arith.constant 0 : i32
    %c0_i32_0 = arith.constant 0 : i32
    %c0_i32_1 = arith.constant 0 : i32
    return %c0_i32, %c0_i32_0 : i32, i32
  }
  func.func @transform_3(%arg0: i32, %arg1: i32) -> (i32, i32) {
    %c0_i32 = arith.constant 0 : i32
    %c0_i32_0 = arith.constant 0 : i32
    return %arg0, %c0_i32 : i32, i32
  }
  func.func @transform_4(%arg0: i32, %arg1: i32) -> (i32, i32) {
    %c0_i32 = arith.constant 0 : i32
    %c0_i32_0 = arith.constant 0 : i32
    return %c0_i32, %arg0 : i32, i32
  }
  func.func @transform_5(%arg0: i32, %arg1: i32) -> (i32, i32) {
    %c0_i32 = arith.constant 0 : i32
    %c0_i32_0 = arith.constant 0 : i32
    return %c0_i32, %arg0 : i32, i32
  }
}

</mosaic_0001>

<llo_original>
// kernel: tpu_custom_call.1
$region0: #{tpu_custom_call.1}
  #allocation0 [shape = 'u32[]', space=smem, size = 0x4, offset = 0x4, fixed_abs, tag = 'smem constant byte address 0x4 - core index']
  #allocation1 [shape = 'u32[72,128]{1,0:T(1,128)}', space=vmem, size = 0x9000, scoped, tag = 'internal scratch']
  #allocation2 [shape = 'f32[1,64]{1,0:T(1,128)}', space=vmem, size = 0x200, scoped, tag = 'scratch operand']
  %s0 = inlined_call_operand.vmem [shape: f32[1,512], index: 0, kind: input, shape index: {}]
  %s1 = inlined_call_operand.hbm [shape: bf16[64,512], index: 1, kind: input, shape index: {}]
  %s2 = inlined_call_operand.vmem [shape: f32[1,8], index: 2, kind: input, shape index: {}]
  %s3 = inlined_call_operand.vmem [shape: bf16[64,8], index: 3, kind: input, shape index: {}]
  %s4 = inlined_call_operand.vmem [shape: f32[1,64], index: 4, kind: input, shape index: {}]
  %s5 = inlined_call_operand.hbm [shape: bf16[1,64], index: 5, kind: output, shape index: {}]
  %s6 = sld [smem:[#allocation0]]
  $region42: #{tpu_custom_call.1} parent=0
    _
  %s8 = ssub.s32 1, %s6
  %s9 = scalar_select 0, %s8, %s6
  $region1: #{tpu_custom_call.1} parent=0
    #allocation3 [shape = 'u8[65536]{0}', space=vmem, size = 0x10000, scoped, tag = 'input window, operand 1, single buffered']
    #allocation4 [shape = 's32[1]{0}', space=sflag, size = 0x4, scoped, tag = 'scoped memory for tpu_custom_call.1']
    #allocation5 [shape = 's32[1]{0}', space=sflag, size = 0x4, scoped, tag = 'scoped memory for tpu_custom_call.1']
    #allocation6 [shape = 'u8[512]{0}', space=vmem, size = 0x400, scoped, tag = 'output window, operand 0, single buffered']
    %10 = vsyncpa [#allocation4], 0
    %11 = vsyncpa [#allocation5], 0
    // Predicated region
    $region2: #{tpu_custom_call.1} parent=1 // pred_check
      _
    $region3: #{tpu_custom_call.1} parent=1 // pred_check_branch
      %13 = sbr.rel (0) target = $region5
    $region4: #{tpu_custom_call.1} parent=1 // pred_region
      _
    $region5: #{tpu_custom_call.1} parent=1 // pred_fallthru
      _
    // Predicated region
    $region6: #{tpu_custom_call.1} parent=1 // pred_check
      _
    $region7: #{tpu_custom_call.1} parent=1 // pred_check_branch
      %15 = sbr.rel (0) target = $region9
    $region8: #{tpu_custom_call.1} parent=1 // pred_region
      %17 = vsyncadd [#allocation4], 0
      %s18 = sshll.u32 %s1, 4
      %s19 = int_to_ptr.hbm [resolvable:$true] %s18
      %s20 = sshll.u32 [#allocation3], 4
      %s21 = int_to_ptr.vmem [resolvable:$true] %s20
      %26 = dma.hbm_to_vmem [thread:$0]  %s19, 2048, %s21, [#allocation4], 256, 256, 16
    $region9: #{tpu_custom_call.1} parent=1 // pred_fallthru
      _
    // Predicated region
    $region10: #{tpu_custom_call.1} parent=1 // pred_check
      _
    $region11: #{tpu_custom_call.1} parent=1 // pred_check_branch
      %28 = sbr.rel (0) target = $region13
    $region12: #{tpu_custom_call.1} parent=1 // pred_region
      _
    $region13: #{tpu_custom_call.1} parent=1 // pred_fallthru
      _
    // Predicated region
    $region14: #{tpu_custom_call.1} parent=1 // pred_check
      _
    $region15: #{tpu_custom_call.1} parent=1 // pred_check_branch
      %30 = sbr.rel (0) target = $region17
    $region16: #{tpu_custom_call.1} parent=1 // pred_region
      _
    $region17: #{tpu_custom_call.1} parent=1 // pred_fallthru
      _
    // Predicated region
    $region18: #{tpu_custom_call.1} parent=1 // pred_check
      _
    $region19: #{tpu_custom_call.1} parent=1 // pred_check_branch
      %32 = sbr.rel (0) target = $region21
    $region20: #{tpu_custom_call.1} parent=1 // pred_region
      _
    $region21: #{tpu_custom_call.1} parent=1 // pred_fallthru
      _
    // Predicated region
    $region22: #{tpu_custom_call.1} parent=1 // pred_check
      _
    $region23: #{tpu_custom_call.1} parent=1 // pred_check_branch
      %34 = sbr.rel (0) target = $region25
    $region24: #{tpu_custom_call.1} parent=1 // pred_region
      %36 = dma.done [#allocation4], 2048
    $region25: #{tpu_custom_call.1} parent=1 // pred_fallthru
      _
    %p38 = scmp.eq.s32.totalorder 0, 0
    // Predicated region
    $region26: #{tpu_custom_call.1} parent=1 // pred_check
      %p39 = pneg %p38
    $region27: #{tpu_custom_call.1} parent=1 // pred_check_branch
      %41 = sbr.rel (%p39) target = $region29
    $region28: #{tpu_custom_call.1} parent=1 // pred_region
      %vm42 = vcmask 516096
      %43 = vst.msk [vmem:[#allocation2] sm:$0x1] %vm42, 0.0
    $region29: #{tpu_custom_call.1} parent=1 // pred_fallthru
      _
    %v44 = vld [vmem:[#allocation2] sm:$0x1]
    %v45 = vld [vmem:[%s0] sm:$0xf]
    %v47 = vperm.slane %v45, 0
    %v48 = vperm.slane %v45, 1
    %v49 = vperm.slane %v45, 2
    %v50 = vperm.slane %v45, 3
    %v55 = vpack.c.bf16 %v47, %v47
    %v56 = vpack.c.bf16 %v48, %v48
    %v57 = vpack.c.bf16 %v49, %v49
    %v58 = vpack.c.bf16 %v50, %v50
    %v59 = vld [vmem:[#allocation3] sm:$0xff]
    %v60 = vld [vmem:[#allocation3 + $0x8] sm:$0xff]
    %v61 = vld [vmem:[#allocation3 + $0x10] sm:$0xff]
    %v62 = vld [vmem:[#allocation3 + $0x18] sm:$0xff]
    %v63 = vld [vmem:[#allocation3 + $0x20] sm:$0xff]
    %v64 = vld [vmem:[#allocation3 + $0x28] sm:$0xff]
    %v65 = vld [vmem:[#allocation3 + $0x30] sm:$0xff]
    %v66 = vld [vmem:[#allocation3 + $0x38] sm:$0xff]
    %v67 = vld [vmem:[#allocation3 + $0x40] sm:$0xff]
    %v68 = vld [vmem:[#allocation3 + $0x48] sm:$0xff]
    %v69 = vld [vmem:[#allocation3 + $0x50] sm:$0xff]
    %v70 = vld [vmem:[#allocation3 + $0x58] sm:$0xff]
    %v71 = vld [vmem:[#allocation3 + $0x60] sm:$0xff]
    %v72 = vld [vmem:[#allocation3 + $0x68] sm:$0xff]
    %v73 = vld [vmem:[#allocation3 + $0x70] sm:$0xff]
    %v74 = vld [vmem:[#allocation3 + $0x78] sm:$0xff]
    %v91 = vunpack.c.l.b16 %v59
    %v92 = vunpack.c.h.b16 %v59
    %v93 = vunpack.c.l.b16 %v60
    %v94 = vunpack.c.h.b16 %v60
    %v95 = vunpack.c.l.b16 %v61
    %v96 = vunpack.c.h.b16 %v61
    %v97 = vunpack.c.l.b16 %v62
    %v98 = vunpack.c.h.b16 %v62
    %v99 = vunpack.c.l.b16 %v63
    %v100 = vunpack.c.h.b16 %v63
    %v101 = vunpack.c.l.b16 %v64
    %v102 = vunpack.c.h.b16 %v64
    %v103 = vunpack.c.l.b16 %v65
    %v104 = vunpack.c.h.b16 %v65
    %v105 = vunpack.c.l.b16 %v66
    %v106 = vunpack.c.h.b16 %v66
    %v107 = vunpack.c.l.b16 %v67
    %v108 = vunpack.c.h.b16 %v67
    %v109 = vunpack.c.l.b16 %v68
    %v110 = vunpack.c.h.b16 %v68
    %v111 = vunpack.c.l.b16 %v69
    %v112 = vunpack.c.h.b16 %v69
    %v113 = vunpack.c.l.b16 %v70
    %v114 = vunpack.c.h.b16 %v70
    %v115 = vunpack.c.l.b16 %v71
    %v116 = vunpack.c.h.b16 %v71
    %v117 = vunpack.c.l.b16 %v72
    %v118 = vunpack.c.h.b16 %v72
    %v119 = vunpack.c.l.b16 %v73
    %v120 = vunpack.c.h.b16 %v73
    %v121 = vunpack.c.l.b16 %v74
    %v122 = vunpack.c.h.b16 %v74
    %v123 = vpack.c.b16 %v95, %v91
    %v124 = vpack.c.b16 %v96, %v92
    %v125 = vpack.c.b16 %v97, %v93
    %v126 = vpack.c.b16 %v98, %v94
    %v127 = vpack.c.b16 %v103, %v99
    %v128 = vpack.c.b16 %v104, %v100
    %v129 = vpack.c.b16 %v105, %v101
    %v130 = vpack.c.b16 %v106, %v102
    %v131 = vpack.c.b16 %v111, %v107
    %v132 = vpack.c.b16 %v112, %v108
    %v133 = vpack.c.b16 %v113, %v109
    %v134 = vpack.c.b16 %v114, %v110
    %v135 = vpack.c.b16 %v119, %v115
    %v136 = vpack.c.b16 %v120, %v116
    %v137 = vpack.c.b16 %v121, %v117
    %v138 = vpack.c.b16 %v122, %v118
    %155 = vmatpush.bf16.xpose.msra.mxu0 0
    %156 = vmatpush.bf16.xpose.msra.mxu0 0
    %157 = vmatpush.bf16.xpose.msra.mxu0 0
    %158 = vmatpush.bf16.xpose.msra.mxu0 0
    %159 = vmatpush.bf16.xpose.msra.mxu0 %v135
    %160 = vmatpush.bf16.xpose.msra.mxu0 %v131
    %161 = vmatpush.bf16.xpose.msra.mxu0 %v127
    %162 = vmatpush.bf16.xpose.msra.mxu0 %v123
    %163 = vmatmul.bf16.gmra.mxu0 %v55
    %v164 = vpop.f32.mrf.mxu0
    %v165 = vadd.f32 0.0, %v164
    %v166 = vpop.f32.mrf.mxu0
    %167 = vdwg.mxu0
    %168 = vmatpush.bf16.xpose.msra.mxu0 0
    %169 = vmatpush.bf16.xpose.msra.mxu0 0
    %170 = vmatpush.bf16.xpose.msra.mxu0 0
    %171 = vmatpush.bf16.xpose.msra.mxu0 0
    %172 = vmatpush.bf16.xpose.msra.mxu0 %v136
    %173 = vmatpush.bf16.xpose.msra.mxu0 %v132
    %174 = vmatpush.bf16.xpose.msra.mxu0 %v128
    %175 = vmatpush.bf16.xpose.msra.mxu0 %v124
    %176 = vmatmul.bf16.gmra.mxu0 %v56
    %v177 = vpop.f32.mrf.mxu0
    %v178 = vadd.f32 %v165, %v177
    %v179 = vpop.f32.mrf.mxu0
    %180 = vdwg.mxu0
    %181 = vmatpush.bf16.xpose.msra.mxu0 0
    %182 = vmatpush.bf16.xpose.msra.mxu0 0
    %183 = vmatpush.bf16.xpose.msra.mxu0 0
    %184 = vmatpush.bf16.xpose.msra.mxu0 0
    %185 = vmatpush.bf16.xpose.msra.mxu0 %v137
    %186 = vmatpush.bf16.xpose.msra.mxu0 %v133
    %187 = vmatpush.bf16.xpose.msra.mxu0 %v129
    %188 = vmatpush.bf16.xpose.msra.mxu0 %v125
    %189 = vmatmul.bf16.gmra.mxu0 %v57
    %v190 = vpop.f32.mrf.mxu0
    %v191 = vadd.f32 %v178, %v190
    %v192 = vpop.f32.mrf.mxu0
    %193 = vdwg.mxu0
    %194 = vmatpush.bf16.xpose.msra.mxu0 0
    %195 = vmatpush.bf16.xpose.msra.mxu0 0
    %196 = vmatpush.bf16.xpose.msra.mxu0 0
    %197 = vmatpush.bf16.xpose.msra.mxu0 0
    %198 = vmatpush.bf16.xpose.msra.mxu0 %v138
    %199 = vmatpush.bf16.xpose.msra.mxu0 %v134
    %200 = vmatpush.bf16.xpose.msra.mxu0 %v130
    %201 = vmatpush.bf16.xpose.msra.mxu0 %v126
    %202 = vmatmul.bf16.gmra.mxu0 %v58
    %v203 = vpop.f32.mrf.mxu0
    %v204 = vadd.f32 %v191, %v203
    %v205 = vpop.f32.mrf.mxu0
    %206 = vdwg.mxu0
    %v207 = vadd.f32 %v44, %v204
    %vm208 = vcmask 516096
    %209 = vst.msk [vmem:[#allocation2] sm:$0x1] %vm208, %v207
    // Predicated region
    $region30: #{tpu_custom_call.1} parent=1 // pred_check
      %p210 = pneg %p38
    $region31: #{tpu_custom_call.1} parent=1 // pred_check_branch
      %212 = sbr.rel (%p210) target = $region33
    $region32: #{tpu_custom_call.1} parent=1 // pred_region
      %v213 = vld [vmem:[#allocation2] sm:$0x1]
      %v214 = vld [vmem:[%s4] sm:$0x1]
      %v215 = vadd.f32 %v213, %v214
      %v216 = vld [vmem:[%s2] sm:$0x1]
      %v217 = vpack.c.bf16 %v216, %v216
      %v218 = vld [vmem:[%s3] sm:$0xf]
      %v219 = vld [vmem:[%s3 + $0x4] sm:$0xf]
      %v220 = vld [vmem:[%s3 + $0x8] sm:$0xf]
      %v221 = vld [vmem:[%s3 + $0xc] sm:$0xf]
      %v222 = vld [vmem:[%s3 + $0x10] sm:$0xf]
      %v223 = vld [vmem:[%s3 + $0x14] sm:$0xf]
      %v224 = vld [vmem:[%s3 + $0x18] sm:$0xf]
      %v225 = vld [vmem:[%s3 + $0x1c] sm:$0xf]
      %v234 = vunpack.c.l.b16 %v218
      %v235 = vunpack.c.l.b16 %v219
      %v236 = vunpack.c.l.b16 %v220
      %v237 = vunpack.c.l.b16 %v221
      %v238 = vunpack.c.l.b16 %v222
      %v239 = vunpack.c.l.b16 %v223
      %v240 = vunpack.c.l.b16 %v224
      %v241 = vunpack.c.l.b16 %v225
      %v242 = vpack.c.b16 %v235, %v234
      %v243 = vpack.c.b16 %v237, %v236
      %v244 = vpack.c.b16 %v239, %v238
      %v245 = vpack.c.b16 %v241, %v240
      %vm246 = vcmask 64512
      %v248 = vsel %vm246, %v217, 0
      %v251 = vsel %vm246, %v242, 0
      %v254 = vsel %vm246, %v243, 0
      %v257 = vsel %vm246, %v244, 0
      %v260 = vsel %vm246, %v245, 0
      %262 = vmatpush.bf16.xpose.msra.mxu0 0
      %263 = vmatpush.bf16.xpose.msra.mxu0 0
      %264 = vmatpush.bf16.xpose.msra.mxu0 0
      %265 = vmatpush.bf16.xpose.msra.mxu0 0
      %266 = vmatpush.bf16.xpose.msra.mxu0 %v260
      %267 = vmatpush.bf16.xpose.msra.mxu0 %v257
      %268 = vmatpush.bf16.xpose.msra.mxu0 %v254
      %269 = vmatpush.bf16.xpose.msra.mxu0 %v251
      %270 = vmatmul.bf16.gmra.mxu0 %v248
      %v271 = vpop.f32.mrf.mxu0
      %v272 = vadd.f32 0.0, %v271
      %v273 = vpop.f32.mrf.mxu0
      %274 = vdwg.mxu0
      %v275 = vadd.f32 %v215, %v272
      %v276 = vmax.f32 %v275, 0.0
      %v277 = vpack.c.bf16 %v276, %v276
      %vm278 = vcmask 516096
      %vm279 = vsmask.f32 256
      %vm280 = vmand %vm278, %vm279
      %v281 = vld [vmem:[#allocation6] sm:$0x1]
      %v282 = vsel %vm280, %v277, %v281
      %283 = vst [vmem:[#allocation6] sm:$0x1] %v282
    $region33: #{tpu_custom_call.1} parent=1 // pred_fallthru
      _
    // Predicated region
    $region34: #{tpu_custom_call.1} parent=1 // pred_check
      _
    $region35: #{tpu_custom_call.1} parent=1 // pred_check_branch
      %285 = sbr.rel (0) target = $region37
    $region36: #{tpu_custom_call.1} parent=1 // pred_region
      %287 = vsyncadd [#allocation5], 0
      %s289 = sshll.u32 [#allocation6], 4
      %s290 = int_to_ptr.vmem [resolvable:$true] %s289
      %s291 = sshll.u32 %s5, 4
      %s292 = int_to_ptr.hbm [resolvable:$true] %s291
      %294 = dma.vmem_to_hbm [thread:$0]  %s290, 16, %s292, [#allocation5]
    $region37: #{tpu_custom_call.1} parent=1 // pred_fallthru
      _
    // Predicated region
    $region38: #{tpu_custom_call.1} parent=1 // pred_check
      _
    $region39: #{tpu_custom_call.1} parent=1 // pred_check_branch
      %296 = sbr.rel (0) target = $region41
    $region40: #{tpu_custom_call.1} parent=1 // pred_region
      %298 = dma.done [#allocation5], 16
    $region41: #{tpu_custom_call.1} parent=1 // pred_fallthru
      _
    %299 = vsyncpa [#allocation4], 1
    %300 = vsyncpa [#allocation5], 1

</llo_original>
